<compile_context>
chip_gen: v5e
topology: v5e:2x2
jax: 0.10.0
libtpu: 0.0.40
codegen_flags: <defaults>
</compile_context>

<pallas_src>
import functools

import jax
import jax.numpy as jnp
from jax.experimental import pallas as pl
from jax.experimental.pallas import tpu as pltpu


def conv_bn_relu_kernel(x_ref, w_ref, b_ref, o_ref, *, H, W, KH, Kc, Cout_pad):
    # x_ref: (1, H+KH-1, W, Kc)   f32 padded input, KW taps pre-folded into channels
    # w_ref: (KH, Kc, Cout_pad)   bf16 BN-folded, Cout-zero-padded weights
    # b_ref: (1, Cout_pad)        f32 BN-folded bias
    # o_ref: (1, H, W, Cout_pad)  f32 output (lane-dense: Cout_pad % 128 == 0)
    def tap(kh):
        # Clean major-axis slice (no W/lane shifts left in the kernel), then a
        # major->sublane merge reshape; cast to bf16 right before the MXU.
        lhs = x_ref[0, kh:kh + H, :, :].reshape(H * W, Kc).astype(jnp.bfloat16)
        return jnp.dot(lhs, w_ref[kh], preferred_element_type=jnp.float32)

    acc = tap(0)
    for kh in range(1, KH):          # static unroll, KH == 3
        acc = acc + tap(kh)

    acc = jnp.maximum(acc + b_ref[...], 0.0)          # folded BN bias + ReLU
    o_ref[...] = acc.reshape(1, H, W, Cout_pad).astype(o_ref.dtype)


def conv_bn_relu(x_nchw, weight_oihw, bias, bn_gamma, bn_beta, bn_mean, bn_var,
                 eps=1e-5):
    N, Cin, H, W = x_nchw.shape
    Cout, Cin_w, KH, KW = weight_oihw.shape
    assert Cin_w == Cin
    pad = 1                      # kernel_size=3, stride=1, padding=1, dilation=1
    LANES = 128
    Cout_pad = ((Cout + LANES - 1) // LANES) * LANES
    Kc = KW * Cin                # contraction per kh-tap

    # ---------- wrapper glue (cheap one-time XLA ops) ----------
    # NCHW -> NHWC, spatial zero-pad.
    x_nhwc = jnp.transpose(x_nchw, (0, 2, 3, 1)).astype(jnp.float32)
    x_pad = jnp.pad(x_nhwc, ((0, 0), (pad, pad), (pad, pad), (0, 0)))
    Hp = H + 2 * pad
    # Fold the KW taps into the channel axis: (N, Hp, W, KW*Cin).
    x_kw = jnp.concatenate([x_pad[:, :, kw:kw + W, :] for kw in range(KW)],
                           axis=-1)

    # Fold inference BatchNorm into the conv weight and bias.
    scale = bn_gamma / jnp.sqrt(bn_var + eps)                 # (Cout,)
    shift = bn_beta - bn_mean * scale
    w_hwio = jnp.transpose(weight_oihw, (2, 3, 1, 0)) * scale  # (KH,KW,Cin,Cout)
    b_fold = bias * scale + shift                              # (Cout,)

    # Zero-pad Cout to a lane-dense multiple of 128; reshape to (KH, KW*Cin, Cout_pad).
    w_p = jnp.pad(w_hwio, ((0, 0), (0, 0), (0, 0), (0, Cout_pad - Cout)))
    w_k = w_p.reshape(KH, Kc, Cout_pad).astype(jnp.bfloat16)   # bf16 MXU operand
    b_k = jnp.pad(b_fold, (0, Cout_pad - Cout)).reshape(1, Cout_pad).astype(jnp.float32)

    kernel = functools.partial(conv_bn_relu_kernel,
                               H=H, W=W, KH=KH, Kc=Kc, Cout_pad=Cout_pad)

    out_nhwc = pl.pallas_call(
        kernel,
        out_shape=jax.ShapeDtypeStruct((N, H, W, Cout_pad), jnp.float32),
        grid=(N,),
        in_specs=[
            pl.BlockSpec((1, Hp, W, Kc), lambda n: (n, 0, 0, 0)),
            pl.BlockSpec((KH, Kc, Cout_pad), lambda n: (0, 0, 0)),
            pl.BlockSpec((1, Cout_pad), lambda n: (0, 0)),
        ],
        out_specs=pl.BlockSpec((1, H, W, Cout_pad), lambda n: (n, 0, 0, 0)),
        compiler_params=pltpu.CompilerParams(
            dimension_semantics=("parallel",)),
    )(x_kw, w_k, b_k)

    out_nhwc = out_nhwc[..., :Cout]                     # drop lane padding
    return jnp.transpose(out_nhwc, (0, 3, 1, 2)).astype(x_nchw.dtype)  # NCHW


if __name__ == "__main__":
    # Small, module-consistent shapes.
    N, Cin, Cout, H, W = 2, 4, 8, 16, 16
    KH = KW = 3

    key = jax.random.PRNGKey(0)
    kx, kw_key = jax.random.split(key)

    x = jax.random.normal(kx, (N, Cin, H, W), dtype=jnp.float32)

    # Deterministic parameters matching ConvBNReLU.__init__ / init_weight:
    #   conv.weight ~ kaiming_normal_(a=1), conv.bias = 0,
    #   bn: gamma=1, beta=0, running_mean=0, running_var=1 (PyTorch defaults).
    fan_in = Cin * KH * KW
    std = (2.0 / (1.0 + 1.0 ** 2)) ** 0.5 / (fan_in ** 0.5)
    conv_w = jax.random.normal(kw_key, (Cout, Cin, KH, KW), dtype=jnp.float32) * std
    conv_b = jnp.zeros((Cout,), jnp.float32)
    bn_gamma = jnp.ones((Cout,), jnp.float32)
    bn_beta = jnp.zeros((Cout,), jnp.float32)
    bn_mean = jnp.zeros((Cout,), jnp.float32)
    bn_var = jnp.ones((Cout,), jnp.float32)

    out = conv_bn_relu(x, conv_w, conv_b, bn_gamma, bn_beta, bn_mean, bn_var)
    out = jax.block_until_ready(out)

    # Reference (plain XLA) using the same bf16-rounded MXU operands and f32
    # accumulation, so only summation order differs from the kernel.
    eps = 1e-5
    scale = bn_gamma / jnp.sqrt(bn_var + eps)
    shift = bn_beta - bn_mean * scale
    w_fold = conv_w * scale.reshape(Cout, 1, 1, 1)
    w_bf = w_fold.astype(jnp.bfloat16).astype(jnp.float32)
    x_bf = x.astype(jnp.bfloat16).astype(jnp.float32)
    ref = jax.lax.conv_general_dilated(
        x_bf, w_bf, window_strides=(1, 1), padding=((1, 1), (1, 1)),
        dimension_numbers=("NCHW", "OIHW", "NCHW"),
        precision=jax.lax.Precision.HIGHEST)
    ref = ref + (conv_b * scale + shift).reshape(1, Cout, 1, 1)
    ref = jnp.maximum(ref, 0.0)

    assert out.shape == (N, Cout, H, W)
    assert jnp.allclose(out, ref, atol=1e-3, rtol=1e-3)

    print("KERNEL_OK")
</pallas_src>

<mosaic_0001>
module attributes {stable_mosaic.version = 11 : i64} {
  func.func @conv_bn_relu_kernel(%arg0: i32, %arg1: memref<1x18x16x12xf32, #tpu.memory_space<vmem>>, %arg2: memref<3x12x128xbf16, #tpu.memory_space<vmem>>, %arg3: memref<1x128xf32, #tpu.memory_space<vmem>>, %arg4: memref<1x16x16x128xf32, #tpu.memory_space<vmem>>) attributes {dimension_semantics = [#tpu.dimension_semantics<parallel>], iteration_bounds = array<i64: 2>, scalar_prefetch = 0 : i64, scratch_operands = 0 : i64, tpu.core_type = #tpu.core_type<tc>, window_params = [{transform_indices = @transform_0, window_bounds = array<i64: 1, 18, 16, 12>}, {pipeline_mode = #tpu.pipeline_mode<synchronous>, transform_indices = @transform_1, window_bounds = array<i64: 3, 12, 128>}, {pipeline_mode = #tpu.pipeline_mode<synchronous>, transform_indices = @transform_2, window_bounds = array<i64: 1, 128>}, {transform_indices = @transform_3, window_bounds = array<i64: 1, 16, 16, 128>}]} {
    %c0 = arith.constant 0 : index
    %c0_0 = arith.constant 0 : index
    %c0_1 = arith.constant 0 : index
    %c0_2 = arith.constant 0 : index
    %0 = vector.load %arg1[%c0, %c0_0, %c0_1, %c0_2] : memref<1x18x16x12xf32, #tpu.memory_space<vmem>>, vector<1x16x16x12xf32>
    %1 = vector.shape_cast %0 : vector<1x16x16x12xf32> to vector<16x16x12xf32>
    %2 = vector.shape_cast %1 : vector<16x16x12xf32> to vector<256x12xf32>
    %3 = arith.truncf %2 : vector<256x12xf32> to vector<256x12xbf16>
    %c0_3 = arith.constant 0 : index
    %c0_4 = arith.constant 0 : index
    %c0_5 = arith.constant 0 : index
    %4 = vector.load %arg2[%c0_3, %c0_4, %c0_5] : memref<3x12x128xbf16, #tpu.memory_space<vmem>>, vector<1x12x128xbf16>
    %5 = vector.shape_cast %4 : vector<1x12x128xbf16> to vector<12x128xbf16>
    %cst = arith.constant dense<0.000000e+00> : vector<256x128xf32>
    %6 = tpu.matmul %3, %5, %cst {dimension_numbers = #tpu.dot_dimension_numbers<[1], [0], [0], [1], [0, 0, 1, 1], [], []>} : vector<256x12xbf16>, vector<12x128xbf16>, vector<256x128xf32> -> vector<256x128xf32>
    %c0_6 = arith.constant 0 : index
    %c1 = arith.constant 1 : index
    %c0_7 = arith.constant 0 : index
    %c0_8 = arith.constant 0 : index
    %7 = vector.load %arg1[%c0_6, %c1, %c0_7, %c0_8] : memref<1x18x16x12xf32, #tpu.memory_space<vmem>>, vector<1x16x16x12xf32>
    %8 = vector.shape_cast %7 : vector<1x16x16x12xf32> to vector<16x16x12xf32>
    %9 = vector.shape_cast %8 : vector<16x16x12xf32> to vector<256x12xf32>
    %10 = arith.truncf %9 : vector<256x12xf32> to vector<256x12xbf16>
    %c1_9 = arith.constant 1 : index
    %c0_10 = arith.constant 0 : index
    %c0_11 = arith.constant 0 : index
    %11 = vector.load %arg2[%c1_9, %c0_10, %c0_11] : memref<3x12x128xbf16, #tpu.memory_space<vmem>>, vector<1x12x128xbf16>
    %12 = vector.shape_cast %11 : vector<1x12x128xbf16> to vector<12x128xbf16>
    %cst_12 = arith.constant dense<0.000000e+00> : vector<256x128xf32>
    %13 = tpu.matmul %10, %12, %cst_12 {dimension_numbers = #tpu.dot_dimension_numbers<[1], [0], [0], [1], [0, 0, 1, 1], [], []>} : vector<256x12xbf16>, vector<12x128xbf16>, vector<256x128xf32> -> vector<256x128xf32>
    %14 = arith.addf %6, %13 : vector<256x128xf32>
    %c0_13 = arith.constant 0 : index
    %c2 = arith.constant 2 : index
    %c0_14 = arith.constant 0 : index
    %c0_15 = arith.constant 0 : index
    %15 = vector.load %arg1[%c0_13, %c2, %c0_14, %c0_15] : memref<1x18x16x12xf32, #tpu.memory_space<vmem>>, vector<1x16x16x12xf32>
    %16 = vector.shape_cast %15 : vector<1x16x16x12xf32> to vector<16x16x12xf32>
    %17 = vector.shape_cast %16 : vector<16x16x12xf32> to vector<256x12xf32>
    %18 = arith.truncf %17 : vector<256x12xf32> to vector<256x12xbf16>
    %c2_16 = arith.constant 2 : index
    %c0_17 = arith.constant 0 : index
    %c0_18 = arith.constant 0 : index
    %19 = vector.load %arg2[%c2_16, %c0_17, %c0_18] : memref<3x12x128xbf16, #tpu.memory_space<vmem>>, vector<1x12x128xbf16>
    %20 = vector.shape_cast %19 : vector<1x12x128xbf16> to vector<12x128xbf16>
    %cst_19 = arith.constant dense<0.000000e+00> : vector<256x128xf32>
    %21 = tpu.matmul %18, %20, %cst_19 {dimension_numbers = #tpu.dot_dimension_numbers<[1], [0], [0], [1], [0, 0, 1, 1], [], []>} : vector<256x12xbf16>, vector<12x128xbf16>, vector<256x128xf32> -> vector<256x128xf32>
    %22 = arith.addf %14, %21 : vector<256x128xf32>
    %c0_20 = arith.constant 0 : index
    %c0_21 = arith.constant 0 : index
    %23 = vector.load %arg3[%c0_20, %c0_21] : memref<1x128xf32, #tpu.memory_space<vmem>>, vector<1x128xf32>
    %24 = vector.broadcast %23 : vector<1x128xf32> to vector<256x128xf32>
    %25 = arith.addf %22, %24 : vector<256x128xf32>
    %cst_22 = arith.constant 0.000000e+00 : f32
    %26 = vector.broadcast %cst_22 : f32 to vector<256x128xf32>
    %27 = arith.maximumf %25, %26 : vector<256x128xf32>
    %28 = vector.shape_cast %27 : vector<256x128xf32> to vector<1x16x16x128xf32>
    %c0_23 = arith.constant 0 : index
    %c0_24 = arith.constant 0 : index
    %c0_25 = arith.constant 0 : index
    %c0_26 = arith.constant 0 : index
    %29 = vector.load %arg4[%c0_23, %c0_24, %c0_25, %c0_26] : memref<1x16x16x128xf32, #tpu.memory_space<vmem>>, vector<1x16x16x128xf32>
    tpu.vector_store %arg4[%c0_23, %c0_24, %c0_25, %c0_26], %28 {strides = array<i32>} : memref<1x16x16x128xf32, #tpu.memory_space<vmem>>, vector<1x16x16x128xf32>,
    return
  }
  func.func @transform_0(%arg0: i32) -> (i32, i32, i32, i32) {
    %c0_i32 = arith.constant 0 : i32
    %c0_i32_0 = arith.constant 0 : i32
    %c0_i32_1 = arith.constant 0 : i32
    %c0_i32_2 = arith.constant 0 : i32
    return %arg0, %c0_i32, %c0_i32_0, %c0_i32_1 : i32, i32, i32, i32
  }
  func.func @transform_1(%arg0: i32) -> (i32, i32, i32) {
    %c0_i32 = arith.constant 0 : i32
    %c0_i32_0 = arith.constant 0 : i32
    %c0_i32_1 = arith.constant 0 : i32
    %c0_i32_2 = arith.constant 0 : i32
    return %c0_i32, %c0_i32_0, %c0_i32_1 : i32, i32, i32
  }
  func.func @transform_2(%arg0: i32) -> (i32, i32) {
    %c0_i32 = arith.constant 0 : i32
    %c0_i32_0 = arith.constant 0 : i32
    %c0_i32_1 = arith.constant 0 : i32
    return %c0_i32, %c0_i32_0 : i32, i32
  }
  func.func @transform_3(%arg0: i32) -> (i32, i32, i32, i32) {
    %c0_i32 = arith.constant 0 : i32
    %c0_i32_0 = arith.constant 0 : i32
    %c0_i32_1 = arith.constant 0 : i32
    %c0_i32_2 = arith.constant 0 : i32
    return %arg0, %c0_i32, %c0_i32_0, %c0_i32_1 : i32, i32, i32, i32
  }
}

</mosaic_0001>

<llo_original>
// kernel: tpu_custom_call.1
$region0: #{tpu_custom_call.1}
  #allocation0 [shape = 'u32[]', space=smem, size = 0x4, offset = 0x4, fixed_abs, tag = 'smem constant byte address 0x4 - core index']
  #allocation1 [shape = 'u32[72,128]{1,0:T(1,128)}', space=vmem, size = 0x9000, scoped, tag = 'internal scratch']
  %s0 = inlined_call_operand.vmem [shape: f32[2,18,16,12], index: 0, kind: input, shape index: {}]
  %s1 = inlined_call_operand.vmem [shape: bf16[3,12,128], index: 1, kind: input, shape index: {}]
  %s2 = inlined_call_operand.vmem [shape: f32[1,128], index: 2, kind: input, shape index: {}]
  %s3 = inlined_call_operand.hbm [shape: f32[2,16,16,128], index: 3, kind: output, shape index: {}]
  %s4 = sld [smem:[#allocation0]]
  $region45: #{tpu_custom_call.1} parent=0
    _
  %s6 = ssub.s32 1, %s4
  %s7 = scalar_select 0, %s6, %s4
  $region1: #{tpu_custom_call.1} parent=0
    #allocation2 [shape = 'u8[262144]{0}', space=vmem, size = 0x40000, scoped, tag = 'output window, operand 0']
    #allocation3 [shape = 's32[2]{0}', space=sflag, size = 0x8, scoped, tag = 'scoped memory for tpu_custom_call.1']
    %8 = vsyncpa [#allocation3], 0
    %s9 = scalar_lea.sflag [#allocation3], 1
    %10 = vsyncpa %s9, 0
    loop: start=0, step=1, limit=4
    $region2: #{tpu_custom_call.1} parent=1 // loop_pre_header
      _
    $region3: #{tpu_custom_call.1} parent=1 // loop_header
      %s12 = sphi 0, %s16
      %p13 = scmp.ge.s32.totalorder %s12, 4
      %s22 = sphi 0, %s24
      %s25 = sphi 0, %s22
      %s26 = sphi 0, %s25
      %s42 = sphi 0, %s26
      %s46 = sphi 0, %s46
      %s48 = sphi 0, %s46
      %s49 = sphi 0, %s48
      %s63 = sphi 0, %s49
      %s67 = sphi 0, %s67
      %s69 = sphi 0, %s67
      %s70 = sphi 0, %s69
      %s84 = sphi 0, %s70
      %s90 = sphi 0, %s92
      %s93 = sphi 0, %s90
      %s94 = sphi 0, %s93
      %s110 = sphi 0, %s94
    $region4: #{tpu_custom_call.1} parent=1 // loop_header_branch
      %15 = sbr.rel (%p13) target = $region8
    $region5: #{tpu_custom_call.1} parent=1 // loop_body
      %s17 = ssub.s32 %s12, 1
      %s18 = ssub.s32 %s12, 2
      %s19 = sadd.s32 %s12, 1
      %s20 = ssub.s32 %s12, %s19
      %p21 = scmp.eq.s32.totalorder %s20, 0
      %s23 = sadd.s32 %s22, 1
      %s24 = scalar_select %p21, %s22, %s23
      %p27 = pneg %p21
      %p28 = scmp.eq.s32.totalorder %s12, 1
      %p29 = por %p27, %p28
      %p30 = scmp.ne.s32.totalorder %s22, %s25
      %p31 = scmp.eq.s32.totalorder %s12, 0
      %p32 = por %p30, %p31
      %p33 = scmp.ne.s32.totalorder %s22, %s25
      %p34 = scmp.eq.s32.totalorder %s17, 1
      %p35 = por %p33, %p34
      %p36 = scmp.ne.s32.totalorder %s25, %s26
      %p37 = scmp.eq.s32.totalorder %s17, 0
      %p38 = por %p36, %p37
      %p39 = scmp.ne.s32.totalorder %s25, %s26
      %p40 = scmp.eq.s32.totalorder %s18, 1
      %p41 = por %p39, %p40
      %p43 = scmp.ne.s32.totalorder %s26, %s42
      %p44 = scmp.eq.s32.totalorder %s18, 0
      %p45 = por %p43, %p44
      %s47 = sadd.s32 %s46, 1
      %p50 = scmp.eq.s32.totalorder %s12, 1
      %p51 = scmp.ne.s32.totalorder %s46, %s48
      %p52 = scmp.eq.s32.totalorder %s12, 0
      %p53 = por %p51, %p52
      %p54 = scmp.ne.s32.totalorder %s46, %s48
      %p55 = scmp.eq.s32.totalorder %s17, 1
      %p56 = por %p54, %p55
      %p57 = scmp.ne.s32.totalorder %s48, %s49
      %p58 = scmp.eq.s32.totalorder %s17, 0
      %p59 = por %p57, %p58
      %p60 = scmp.ne.s32.totalorder %s48, %s49
      %p61 = scmp.eq.s32.totalorder %s18, 1
      %p62 = por %p60, %p61
      %p64 = scmp.ne.s32.totalorder %s49, %s63
      %p65 = scmp.eq.s32.totalorder %s18, 0
      %p66 = por %p64, %p65
      %s68 = sadd.s32 %s67, 1
      %p71 = scmp.eq.s32.totalorder %s12, 1
      %p72 = scmp.ne.s32.totalorder %s67, %s69
      %p73 = scmp.eq.s32.totalorder %s12, 0
      %p74 = por %p72, %p73
      %p75 = scmp.ne.s32.totalorder %s67, %s69
      %p76 = scmp.eq.s32.totalorder %s17, 1
      %p77 = por %p75, %p76
      %p78 = scmp.ne.s32.totalorder %s69, %s70
      %p79 = scmp.eq.s32.totalorder %s17, 0
      %p80 = por %p78, %p79
      %p81 = scmp.ne.s32.totalorder %s69, %s70
      %p82 = scmp.eq.s32.totalorder %s18, 1
      %p83 = por %p81, %p82
      %p85 = scmp.ne.s32.totalorder %s70, %s84
      %p86 = scmp.eq.s32.totalorder %s18, 0
      %p87 = por %p85, %p86
      %s88 = ssub.s32 %s12, %s19
      %p89 = scmp.eq.s32.totalorder %s88, 0
      %s91 = sadd.s32 %s90, 1
      %s92 = scalar_select %p89, %s90, %s91
      %p95 = pneg %p89
      %p96 = scmp.eq.s32.totalorder %s12, 1
      %p97 = por %p95, %p96
      %p98 = scmp.ne.s32.totalorder %s90, %s93
      %p99 = scmp.eq.s32.totalorder %s12, 0
      %p100 = por %p98, %p99
      %p101 = scmp.ne.s32.totalorder %s90, %s93
      %p102 = scmp.eq.s32.totalorder %s17, 1
      %p103 = por %p101, %p102
      %p104 = scmp.ne.s32.totalorder %s93, %s94
      %p105 = scmp.eq.s32.totalorder %s17, 0
      %p106 = por %p104, %p105
      %p107 = scmp.ne.s32.totalorder %s93, %s94
      %p108 = scmp.eq.s32.totalorder %s18, 1
      %p109 = por %p107, %p108
      %p111 = scmp.ne.s32.totalorder %s94, %s110
      %p112 = scmp.eq.s32.totalorder %s18, 0
      %p113 = por %p111, %p112
      %p114 = scmp.le.s32.totalorder 1, %s12
      %p115 = scmp.lt.s32.totalorder %s12, 3
      %p116 = pnand %p114, %p115
      %p117 = pneg %p116
      // Predicated region
      $region9: #{tpu_custom_call.1} parent=5 // pred_check
        _
      $region10: #{tpu_custom_call.1} parent=5 // pred_check_branch
        %119 = sbr.rel (%p116) target = $region12
      $region11: #{tpu_custom_call.1} parent=5 // pred_region
        %s120 = ssub.s32 %s12, 1
        // Predicated region
        $region13: #{tpu_custom_call.1} parent=11 // pred_check
          %p121 = pneg %p59
        $region14: #{tpu_custom_call.1} parent=11 // pred_check_branch
          %123 = sbr.rel (%p121) target = $region16
        $region15: #{tpu_custom_call.1} parent=11 // pred_region
          _
        $region16: #{tpu_custom_call.1} parent=11 // pred_fallthru
          _
        // Predicated region
        $region17: #{tpu_custom_call.1} parent=11 // pred_check
          %p124 = pneg %p80
        $region18: #{tpu_custom_call.1} parent=11 // pred_check_branch
          %126 = sbr.rel (%p124) target = $region20
        $region19: #{tpu_custom_call.1} parent=11 // pred_region
          _
        $region20: #{tpu_custom_call.1} parent=11 // pred_fallthru
          _
      $region12: #{tpu_custom_call.1} parent=5 // pred_fallthru
        _
      %p127 = scmp.lt.s32.totalorder %s12, 2
      // Predicated region
      $region21: #{tpu_custom_call.1} parent=5 // pred_check
        %p128 = pneg %p127
      $region22: #{tpu_custom_call.1} parent=5 // pred_check_branch
        %130 = sbr.rel (%p128) target = $region24
      $region23: #{tpu_custom_call.1} parent=5 // pred_region
        // Predicated region
        $region25: #{tpu_custom_call.1} parent=23 // pred_check
          %p131 = pneg %p32
        $region26: #{tpu_custom_call.1} parent=23 // pred_check_branch
          %133 = sbr.rel (%p131) target = $region28
        $region27: #{tpu_custom_call.1} parent=23 // pred_region
          %p134 = scmp.lt.s32.totalorder %s12, 1
          %s135 = scalar_select %p134, %s12, 1
          %s136 = smul.addr %s135, 36
          %s137 = smul.addr %s136, 8
          %s138 = scalar_lea.vmem %s0, %s137
        $region28: #{tpu_custom_call.1} parent=23 // pred_fallthru
          _
      $region24: #{tpu_custom_call.1} parent=5 // pred_fallthru
        _
      %p139 = scmp.le.s32.totalorder 1, %s12
      %p140 = scmp.lt.s32.totalorder %s12, 3
      %p141 = pnand %p139, %p140
      %p142 = pneg %p141
      // Predicated region
      $region29: #{tpu_custom_call.1} parent=5 // pred_check
        _
      $region30: #{tpu_custom_call.1} parent=5 // pred_check_branch
        %144 = sbr.rel (%p141) target = $region32
      $region31: #{tpu_custom_call.1} parent=5 // pred_region
        %s145 = ssub.s32 %s12, 1
        %p146 = scmp.lt.s32.totalorder %s17, 1
        %s147 = scalar_select %p146, %s17, 1
        %s148 = smul.addr %s147, 36
        %s149 = smul.addr %s148, 8
        %s150 = scalar_lea.vmem %s0, %s149
        %p151 = pneg %p38
        %p152 = pneg %p35
        %p153 = pneg %p59
        %p154 = pneg %p56
        %p155 = pneg %p80
        %p156 = pneg %p77
        %p157 = pneg %p106
        %p158 = pneg %p103
        %s159 = sand.u32 %s93, 1
        %s160 = scalar_lea.sflag [#allocation3], %s159
        %s161 = sand.u32 %s93, 1
        %s162 = smul.addr %s161, 256
        %s163 = scalar_lea.vmem [#allocation2], %s162
        %p164 = scmp.lt.s32.totalorder %s17, 1
        %s165 = scalar_select %p164, %s17, 1
        %s166 = smul.addr %s165, 36
        %s167 = smul.addr %s166, 8
        %s168 = scalar_lea.vmem %s0, %s167
        %v170 = vld [vmem:[%s168] sm:$0xff]
        %v171 = vld [vmem:[%s168 + $0x8] sm:$0xff]
        %v172 = vld [vmem:[%s168 + $0x10] sm:$0xff]
        %v173 = vld [vmem:[%s168 + $0x18] sm:$0xff]
        %v174 = vld [vmem:[%s168 + $0x20] sm:$0xff]
        %v175 = vld [vmem:[%s168 + $0x28] sm:$0xff]
        %v176 = vld [vmem:[%s168 + $0x30] sm:$0xff]
        %v177 = vld [vmem:[%s168 + $0x38] sm:$0xff]
        %v178 = vld [vmem:[%s168 + $0x40] sm:$0xff]
        %v179 = vld [vmem:[%s168 + $0x48] sm:$0xff]
        %v180 = vld [vmem:[%s168 + $0x50] sm:$0xff]
        %v181 = vld [vmem:[%s168 + $0x58] sm:$0xff]
        %v182 = vld [vmem:[%s168 + $0x60] sm:$0xff]
        %v183 = vld [vmem:[%s168 + $0x68] sm:$0xff]
        %v184 = vld [vmem:[%s168 + $0x70] sm:$0xff]
        %v185 = vld [vmem:[%s168 + $0x78] sm:$0xff]
        %v186 = vld [vmem:[%s168 + $0x80] sm:$0xff]
        %v187 = vld [vmem:[%s168 + $0x88] sm:$0xff]
        %v188 = vld [vmem:[%s168 + $0x90] sm:$0xff]
        %v189 = vld [vmem:[%s168 + $0x98] sm:$0xff]
        %v190 = vld [vmem:[%s168 + $0xa0] sm:$0xff]
        %v191 = vld [vmem:[%s168 + $0xa8] sm:$0xff]
        %v192 = vld [vmem:[%s168 + $0xb0] sm:$0xff]
        %v193 = vld [vmem:[%s168 + $0xb8] sm:$0xff]
        %v194 = vld [vmem:[%s168 + $0xc0] sm:$0xff]
        %v195 = vld [vmem:[%s168 + $0xc8] sm:$0xff]
        %v196 = vld [vmem:[%s168 + $0xd0] sm:$0xff]
        %v197 = vld [vmem:[%s168 + $0xd8] sm:$0xff]
        %v198 = vld [vmem:[%s168 + $0xe0] sm:$0xff]
        %v199 = vld [vmem:[%s168 + $0xe8] sm:$0xff]
        %v200 = vld [vmem:[%s168 + $0xf0] sm:$0xff]
        %v201 = vld [vmem:[%s168 + $0xf8] sm:$0xff]
        %v202 = vpack.c.bf16 %v171, %v170
        %v203 = vpack.c.bf16 %v173, %v172
        %v204 = vpack.c.bf16 %v175, %v174
        %v205 = vpack.c.bf16 %v177, %v176
        %v206 = vpack.c.bf16 %v179, %v178
        %v207 = vpack.c.bf16 %v181, %v180
        %v208 = vpack.c.bf16 %v183, %v182
        %v209 = vpack.c.bf16 %v185, %v184
        %v210 = vpack.c.bf16 %v187, %v186
        %v211 = vpack.c.bf16 %v189, %v188
        %v212 = vpack.c.bf16 %v191, %v190
        %v213 = vpack.c.bf16 %v193, %v192
        %v214 = vpack.c.bf16 %v195, %v194
        %v215 = vpack.c.bf16 %v197, %v196
        %v216 = vpack.c.bf16 %v199, %v198
        %v217 = vpack.c.bf16 %v201, %v200
        %v218 = vld [vmem:[%s1] sm:$0xf]
        %v219 = vld [vmem:[%s1 + $0x4] sm:$0x3]
        %s220 = scalar_lea.vmem %s168, 16
        %v221 = vld [vmem:[%s220] sm:$0xff]
        %v222 = vld [vmem:[%s220 + $0x8] sm:$0xff]
        %v223 = vld [vmem:[%s220 + $0x10] sm:$0xff]
        %v224 = vld [vmem:[%s220 + $0x18] sm:$0xff]
        %v225 = vld [vmem:[%s220 + $0x20] sm:$0xff]
        %v226 = vld [vmem:[%s220 + $0x28] sm:$0xff]
        %v227 = vld [vmem:[%s220 + $0x30] sm:$0xff]
        %v228 = vld [vmem:[%s220 + $0x38] sm:$0xff]
        %v229 = vld [vmem:[%s220 + $0x40] sm:$0xff]
        %v230 = vld [vmem:[%s220 + $0x48] sm:$0xff]
        %v231 = vld [vmem:[%s220 + $0x50] sm:$0xff]
        %v232 = vld [vmem:[%s220 + $0x58] sm:$0xff]
        %v233 = vld [vmem:[%s220 + $0x60] sm:$0xff]
        %v234 = vld [vmem:[%s220 + $0x68] sm:$0xff]
        %v235 = vld [vmem:[%s220 + $0x70] sm:$0xff]
        %v236 = vld [vmem:[%s220 + $0x78] sm:$0xff]
        %v237 = vld [vmem:[%s220 + $0x80] sm:$0xff]
        %v238 = vld [vmem:[%s220 + $0x88] sm:$0xff]
        %v239 = vld [vmem:[%s220 + $0x90] sm:$0xff]
        %v240 = vld [vmem:[%s220 + $0x98] sm:$0xff]
        %v241 = vld [vmem:[%s220 + $0xa0] sm:$0xff]
        %v242 = vld [vmem:[%s220 + $0xa8] sm:$0xff]
        %v243 = vld [vmem:[%s220 + $0xb0] sm:$0xff]
        %v244 = vld [vmem:[%s220 + $0xb8] sm:$0xff]
        %v245 = vld [vmem:[%s220 + $0xc0] sm:$0xff]
        %v246 = vld [vmem:[%s220 + $0xc8] sm:$0xff]
        %v247 = vld [vmem:[%s220 + $0xd0] sm:$0xff]
        %v248 = vld [vmem:[%s220 + $0xd8] sm:$0xff]
        %v249 = vld [vmem:[%s220 + $0xe0] sm:$0xff]
        %v250 = vld [vmem:[%s220 + $0xe8] sm:$0xff]
        %v251 = vld [vmem:[%s220 + $0xf0] sm:$0xff]
        %v252 = vld [vmem:[%s220 + $0xf8] sm:$0xff]
        %v253 = vpack.c.bf16 %v222, %v221
        %v254 = vpack.c.bf16 %v224, %v223
        %v255 = vpack.c.bf16 %v226, %v225
        %v256 = vpack.c.bf16 %v228, %v227
        %v257 = vpack.c.bf16 %v230, %v229
        %v258 = vpack.c.bf16 %v232, %v231
        %v259 = vpack.c.bf16 %v234, %v233
        %v260 = vpack.c.bf16 %v236, %v235
        %v261 = vpack.c.bf16 %v238, %v237
        %v262 = vpack.c.bf16 %v240, %v239
        %v263 = vpack.c.bf16 %v242, %v241
        %v264 = vpack.c.bf16 %v244, %v243
        %v265 = vpack.c.bf16 %v246, %v245
        %v266 = vpack.c.bf16 %v248, %v247
        %v267 = vpack.c.bf16 %v250, %v249
        %v268 = vpack.c.bf16 %v252, %v251
        %s269 = scalar_lea.vmem %s1, 8
        %v270 = vld [vmem:[%s269] sm:$0xf]
        %v271 = vld [vmem:[%s269 + $0x4] sm:$0x3]
        %v274 = vunpack.c.l.b16 %v270
        %v275 = vunpack.c.l.b16 %v271
        %v276 = vpack.c.b16 %v275, %v274
        %vm277 = vcmask 97280
        %v279 = vsel %vm277, %v253, 0
        %v282 = vsel %vm277, %v254, 0
        %v285 = vsel %vm277, %v255, 0
        %v288 = vsel %vm277, %v256, 0
        %v291 = vsel %vm277, %v257, 0
        %v294 = vsel %vm277, %v258, 0
        %v297 = vsel %vm277, %v259, 0
        %v300 = vsel %vm277, %v260, 0
        %v303 = vsel %vm277, %v261, 0
        %v306 = vsel %vm277, %v262, 0
        %v309 = vsel %vm277, %v263, 0
        %v312 = vsel %vm277, %v264, 0
        %v315 = vsel %vm277, %v265, 0
        %v318 = vsel %vm277, %v266, 0
        %v321 = vsel %vm277, %v267, 0
        %v324 = vsel %vm277, %v268, 0
        %vm326 = vcmask 1045504
        %v328 = vsel %vm326, %v276, 0
        %330 = vmatpush.bf16.msra.mxu0 0
        %331 = vmatpush.bf16.msra.mxu0 0
        %332 = vmatpush.bf16.msra.mxu0 0
        %333 = vmatpush.bf16.msra.mxu0 0
        %334 = vmatpush.bf16.msra.mxu0 0
        %335 = vmatpush.bf16.msra.mxu0 0
        %336 = vmatpush.bf16.msra.mxu0 0
        %337 = vmatpush.bf16.msra.mxu0 %v328
        %338 = vmatmul.bf16.gmra.mxu0 %v279
        %v339 = vpop.f32.mrf.mxu0
        %v340 = vadd.f32 0.0, %v339
        %v341 = vpop.f32.mrf.mxu0
        %v342 = vadd.f32 0.0, %v341
        %343 = vmatmul.bf16.gmra.mxu0 %v282
        %v344 = vpop.f32.mrf.mxu0
        %v345 = vadd.f32 0.0, %v344
        %v346 = vpop.f32.mrf.mxu0
        %v347 = vadd.f32 0.0, %v346
        %348 = vmatmul.bf16.gmra.mxu0 %v285
        %v349 = vpop.f32.mrf.mxu0
        %v350 = vadd.f32 0.0, %v349
        %v351 = vpop.f32.mrf.mxu0
        %v352 = vadd.f32 0.0, %v351
        %353 = vmatmul.bf16.gmra.mxu0 %v288
        %v354 = vpop.f32.mrf.mxu0
        %v355 = vadd.f32 0.0, %v354
        %v356 = vpop.f32.mrf.mxu0
        %v357 = vadd.f32 0.0, %v356
        %358 = vmatmul.bf16.gmra.mxu0 %v291
        %v359 = vpop.f32.mrf.mxu0
        %v360 = vadd.f32 0.0, %v359
        %v361 = vpop.f32.mrf.mxu0
        %v362 = vadd.f32 0.0, %v361
        %363 = vmatmul.bf16.gmra.mxu0 %v294
        %v364 = vpop.f32.mrf.mxu0
        %v365 = vadd.f32 0.0, %v364
        %v366 = vpop.f32.mrf.mxu0
        %v367 = vadd.f32 0.0, %v366
        %368 = vmatmul.bf16.gmra.mxu0 %v297
        %v369 = vpop.f32.mrf.mxu0
        %v370 = vadd.f32 0.0, %v369
        %v371 = vpop.f32.mrf.mxu0
        %v372 = vadd.f32 0.0, %v371
        %373 = vmatmul.bf16.gmra.mxu0 %v300
        %v374 = vpop.f32.mrf.mxu0
        %v375 = vadd.f32 0.0, %v374
        %v376 = vpop.f32.mrf.mxu0
        %v377 = vadd.f32 0.0, %v376
        %378 = vmatmul.bf16.gmra.mxu0 %v303
        %v379 = vpop.f32.mrf.mxu0
        %v380 = vadd.f32 0.0, %v379
        %v381 = vpop.f32.mrf.mxu0
        %v382 = vadd.f32 0.0, %v381
        %383 = vmatmul.bf16.gmra.mxu0 %v306
        %v384 = vpop.f32.mrf.mxu0
        %v385 = vadd.f32 0.0, %v384
        %v386 = vpop.f32.mrf.mxu0
        %v387 = vadd.f32 0.0, %v386
        %388 = vmatmul.bf16.gmra.mxu0 %v309
        %v389 = vpop.f32.mrf.mxu0
        %v390 = vadd.f32 0.0, %v389
        %v391 = vpop.f32.mrf.mxu0
        %v392 = vadd.f32 0.0, %v391
        %393 = vmatmul.bf16.gmra.mxu0 %v312
        %v394 = vpop.f32.mrf.mxu0
        %v395 = vadd.f32 0.0, %v394
        %v396 = vpop.f32.mrf.mxu0
        %v397 = vadd.f32 0.0, %v396
        %398 = vmatmul.bf16.gmra.mxu0 %v315
        %v399 = vpop.f32.mrf.mxu0
        %v400 = vadd.f32 0.0, %v399
        %v401 = vpop.f32.mrf.mxu0
        %v402 = vadd.f32 0.0, %v401
        %403 = vmatmul.bf16.gmra.mxu0 %v318
        %v404 = vpop.f32.mrf.mxu0
        %v405 = vadd.f32 0.0, %v404
        %v406 = vpop.f32.mrf.mxu0
        %v407 = vadd.f32 0.0, %v406
        %408 = vmatmul.bf16.gmra.mxu0 %v321
        %v409 = vpop.f32.mrf.mxu0
        %v410 = vadd.f32 0.0, %v409
        %v411 = vpop.f32.mrf.mxu0
        %v412 = vadd.f32 0.0, %v411
        %413 = vmatmul.bf16.gmra.mxu0 %v324
        %v414 = vpop.f32.mrf.mxu0
        %v415 = vadd.f32 0.0, %v414
        %v416 = vpop.f32.mrf.mxu0
        %v417 = vadd.f32 0.0, %v416
        %418 = vdwg.mxu0
        %v421 = vunpack.c.l.b16 %v218
        %v422 = vunpack.c.l.b16 %v219
        %v423 = vpack.c.b16 %v422, %v421
        %v425 = vsel %vm277, %v202, 0
        %v428 = vsel %vm277, %v203, 0
        %v431 = vsel %vm277, %v204, 0
        %v434 = vsel %vm277, %v205, 0
        %v437 = vsel %vm277, %v206, 0
        %v440 = vsel %vm277, %v207, 0
        %v443 = vsel %vm277, %v208, 0
        %v446 = vsel %vm277, %v209, 0
        %v449 = vsel %vm277, %v210, 0
        %v452 = vsel %vm277, %v211, 0
        %v455 = vsel %vm277, %v212, 0
        %v458 = vsel %vm277, %v213, 0
        %v461 = vsel %vm277, %v214, 0
        %v464 = vsel %vm277, %v215, 0
        %v467 = vsel %vm277, %v216, 0
        %v470 = vsel %vm277, %v217, 0
        %v473 = vsel %vm326, %v423, 0
        %475 = vmatpush.bf16.msra.mxu0 0
        %476 = vmatpush.bf16.msra.mxu0 0
        %477 = vmatpush.bf16.msra.mxu0 0
        %478 = vmatpush.bf16.msra.mxu0 0
        %479 = vmatpush.bf16.msra.mxu0 0
        %480 = vmatpush.bf16.msra.mxu0 0
        %481 = vmatpush.bf16.msra.mxu0 0
        %482 = vmatpush.bf16.msra.mxu0 %v473
        %483 = vmatmul.bf16.gmra.mxu0 %v425
        %v484 = vpop.f32.mrf.mxu0
        %v485 = vadd.f32 %v340, %v484
        %v486 = vpop.f32.mrf.mxu0
        %v487 = vadd.f32 %v342, %v486
        %488 = vmatmul.bf16.gmra.mxu0 %v428
        %v489 = vpop.f32.mrf.mxu0
        %v490 = vadd.f32 %v345, %v489
        %v491 = vpop.f32.mrf.mxu0
        %v492 = vadd.f32 %v347, %v491
        %493 = vmatmul.bf16.gmra.mxu0 %v431
        %v494 = vpop.f32.mrf.mxu0
        %v495 = vadd.f32 %v350, %v494
        %v496 = vpop.f32.mrf.mxu0
        %v497 = vadd.f32 %v352, %v496
        %498 = vmatmul.bf16.gmra.mxu0 %v434
        %v499 = vpop.f32.mrf.mxu0
        %v500 = vadd.f32 %v355, %v499
        %v501 = vpop.f32.mrf.mxu0
        %v502 = vadd.f32 %v357, %v501
        %503 = vmatmul.bf16.gmra.mxu0 %v437
        %v504 = vpop.f32.mrf.mxu0
        %v505 = vadd.f32 %v360, %v504
        %v506 = vpop.f32.mrf.mxu0
        %v507 = vadd.f32 %v362, %v506
        %508 = vmatmul.bf16.gmra.mxu0 %v440
        %v509 = vpop.f32.mrf.mxu0
        %v510 = vadd.f32 %v365, %v509
        %v511 = vpop.f32.mrf.mxu0
        %v512 = vadd.f32 %v367, %v511
        %513 = vmatmul.bf16.gmra.mxu0 %v443
        %v514 = vpop.f32.mrf.mxu0
        %v515 = vadd.f32 %v370, %v514
        %v516 = vpop.f32.mrf.mxu0
        %v517 = vadd.f32 %v372, %v516
        %518 = vmatmul.bf16.gmra.mxu0 %v446
        %v519 = vpop.f32.mrf.mxu0
        %v520 = vadd.f32 %v375, %v519
        %v521 = vpop.f32.mrf.mxu0
        %v522 = vadd.f32 %v377, %v521
        %523 = vmatmul.bf16.gmra.mxu0 %v449
        %v524 = vpop.f32.mrf.mxu0
        %v525 = vadd.f32 %v380, %v524
        %v526 = vpop.f32.mrf.mxu0
        %v527 = vadd.f32 %v382, %v526
        %528 = vmatmul.bf16.gmra.mxu0 %v452
        %v529 = vpop.f32.mrf.mxu0
        %v530 = vadd.f32 %v385, %v529
        %v531 = vpop.f32.mrf.mxu0
        %v532 = vadd.f32 %v387, %v531
        %533 = vmatmul.bf16.gmra.mxu0 %v455
        %v534 = vpop.f32.mrf.mxu0
        %v535 = vadd.f32 %v390, %v534
        %v536 = vpop.f32.mrf.mxu0
        %v537 = vadd.f32 %v392, %v536
        %538 = vmatmul.bf16.gmra.mxu0 %v458
        %v539 = vpop.f32.mrf.mxu0
        %v540 = vadd.f32 %v395, %v539
        %v541 = vpop.f32.mrf.mxu0
        %v542 = vadd.f32 %v397, %v541
        %543 = vmatmul.bf16.gmra.mxu0 %v461
        %v544 = vpop.f32.mrf.mxu0
        %v545 = vadd.f32 %v400, %v544
        %v546 = vpop.f32.mrf.mxu0
        %v547 = vadd.f32 %v402, %v546
        %548 = vmatmul.bf16.gmra.mxu0 %v464
        %v549 = vpop.f32.mrf.mxu0
        %v550 = vadd.f32 %v405, %v549
        %v551 = vpop.f32.mrf.mxu0
        %v552 = vadd.f32 %v407, %v551
        %553 = vmatmul.bf16.gmra.mxu0 %v467
        %v554 = vpop.f32.mrf.mxu0
        %v555 = vadd.f32 %v410, %v554
        %v556 = vpop.f32.mrf.mxu0
        %v557 = vadd.f32 %v412, %v556
        %558 = vmatmul.bf16.gmra.mxu0 %v470
        %v559 = vpop.f32.mrf.mxu0
        %v560 = vadd.f32 %v415, %v559
        %v561 = vpop.f32.mrf.mxu0
        %v562 = vadd.f32 %v417, %v561
        %563 = vdwg.mxu0
        %s564 = scalar_lea.vmem %s168, 32
        %v565 = vld [vmem:[%s564] sm:$0xff]
        %v566 = vld [vmem:[%s564 + $0x8] sm:$0xff]
        %v567 = vld [vmem:[%s564 + $0x10] sm:$0xff]
        %v568 = vld [vmem:[%s564 + $0x18] sm:$0xff]
        %v569 = vld [vmem:[%s564 + $0x20] sm:$0xff]
        %v570 = vld [vmem:[%s564 + $0x28] sm:$0xff]
        %v571 = vld [vmem:[%s564 + $0x30] sm:$0xff]
        %v572 = vld [vmem:[%s564 + $0x38] sm:$0xff]
        %v573 = vld [vmem:[%s564 + $0x40] sm:$0xff]
        %v574 = vld [vmem:[%s564 + $0x48] sm:$0xff]
        %v575 = vld [vmem:[%s564 + $0x50] sm:$0xff]
        %v576 = vld [vmem:[%s564 + $0x58] sm:$0xff]
        %v577 = vld [vmem:[%s564 + $0x60] sm:$0xff]
        %v578 = vld [vmem:[%s564 + $0x68] sm:$0xff]
        %v579 = vld [vmem:[%s564 + $0x70] sm:$0xff]
        %v580 = vld [vmem:[%s564 + $0x78] sm:$0xff]
        %v581 = vld [vmem:[%s564 + $0x80] sm:$0xff]
        %v582 = vld [vmem:[%s564 + $0x88] sm:$0xff]
        %v583 = vld [vmem:[%s564 + $0x90] sm:$0xff]
        %v584 = vld [vmem:[%s564 + $0x98] sm:$0xff]
        %v585 = vld [vmem:[%s564 + $0xa0] sm:$0xff]
        %v586 = vld [vmem:[%s564 + $0xa8] sm:$0xff]
        %v587 = vld [vmem:[%s564 + $0xb0] sm:$0xff]
        %v588 = vld [vmem:[%s564 + $0xb8] sm:$0xff]
        %v589 = vld [vmem:[%s564 + $0xc0] sm:$0xff]
        %v590 = vld [vmem:[%s564 + $0xc8] sm:$0xff]
        %v591 = vld [vmem:[%s564 + $0xd0] sm:$0xff]
        %v592 = vld [vmem:[%s564 + $0xd8] sm:$0xff]
        %v593 = vld [vmem:[%s564 + $0xe0] sm:$0xff]
        %v594 = vld [vmem:[%s564 + $0xe8] sm:$0xff]
        %v595 = vld [vmem:[%s564 + $0xf0] sm:$0xff]
        %v596 = vld [vmem:[%s564 + $0xf8] sm:$0xff]
        %v597 = vpack.c.bf16 %v566, %v565
        %v598 = vpack.c.bf16 %v568, %v567
        %v599 = vpack.c.bf16 %v570, %v569
        %v600 = vpack.c.bf16 %v572, %v571
        %v601 = vpack.c.bf16 %v574, %v573
        %v602 = vpack.c.bf16 %v576, %v575
        %v603 = vpack.c.bf16 %v578, %v577
        %v604 = vpack.c.bf16 %v580, %v579
        %v605 = vpack.c.bf16 %v582, %v581
        %v606 = vpack.c.bf16 %v584, %v583
        %v607 = vpack.c.bf16 %v586, %v585
        %v608 = vpack.c.bf16 %v588, %v587
        %v609 = vpack.c.bf16 %v590, %v589
        %v610 = vpack.c.bf16 %v592, %v591
        %v611 = vpack.c.bf16 %v594, %v593
        %v612 = vpack.c.bf16 %v596, %v595
        %s613 = scalar_lea.vmem %s1, 16
        %v614 = vld [vmem:[%s613] sm:$0xf]
        %v615 = vld [vmem:[%s613 + $0x4] sm:$0x3]
        %v618 = vunpack.c.l.b16 %v614
        %v619 = vunpack.c.l.b16 %v615
        %v620 = vpack.c.b16 %v619, %v618
        %v622 = vsel %vm277, %v597, 0
        %v625 = vsel %vm277, %v598, 0
        %v628 = vsel %vm277, %v599, 0
        %v631 = vsel %vm277, %v600, 0
        %v634 = vsel %vm277, %v601, 0
        %v637 = vsel %vm277, %v602, 0
        %v640 = vsel %vm277, %v603, 0
        %v643 = vsel %vm277, %v604, 0
        %v646 = vsel %vm277, %v605, 0
        %v649 = vsel %vm277, %v606, 0
        %v652 = vsel %vm277, %v607, 0
        %v655 = vsel %vm277, %v608, 0
        %v658 = vsel %vm277, %v609, 0
        %v661 = vsel %vm277, %v610, 0
        %v664 = vsel %vm277, %v611, 0
        %v667 = vsel %vm277, %v612, 0
        %v670 = vsel %vm326, %v620, 0
        %672 = vmatpush.bf16.msra.mxu0 0
        %673 = vmatpush.bf16.msra.mxu0 0
        %674 = vmatpush.bf16.msra.mxu0 0
        %675 = vmatpush.bf16.msra.mxu0 0
        %676 = vmatpush.bf16.msra.mxu0 0
        %677 = vmatpush.bf16.msra.mxu0 0
        %678 = vmatpush.bf16.msra.mxu0 0
        %679 = vmatpush.bf16.msra.mxu0 %v670
        %680 = vmatmul.bf16.gmra.mxu0 %v622
        %v681 = vpop.f32.mrf.mxu0
        %v682 = vadd.f32 0.0, %v681
        %v683 = vpop.f32.mrf.mxu0
        %v684 = vadd.f32 0.0, %v683
        %685 = vmatmul.bf16.gmra.mxu0 %v625
        %v686 = vpop.f32.mrf.mxu0
        %v687 = vadd.f32 0.0, %v686
        %v688 = vpop.f32.mrf.mxu0
        %v689 = vadd.f32 0.0, %v688
        %690 = vmatmul.bf16.gmra.mxu0 %v628
        %v691 = vpop.f32.mrf.mxu0
        %v692 = vadd.f32 0.0, %v691
        %v693 = vpop.f32.mrf.mxu0
        %v694 = vadd.f32 0.0, %v693
        %695 = vmatmul.bf16.gmra.mxu0 %v631
        %v696 = vpop.f32.mrf.mxu0
        %v697 = vadd.f32 0.0, %v696
        %v698 = vpop.f32.mrf.mxu0
        %v699 = vadd.f32 0.0, %v698
        %700 = vmatmul.bf16.gmra.mxu0 %v634
        %v701 = vpop.f32.mrf.mxu0
        %v702 = vadd.f32 0.0, %v701
        %v703 = vpop.f32.mrf.mxu0
        %v704 = vadd.f32 0.0, %v703
        %705 = vmatmul.bf16.gmra.mxu0 %v637
        %v706 = vpop.f32.mrf.mxu0
        %v707 = vadd.f32 0.0, %v706
        %v708 = vpop.f32.mrf.mxu0
        %v709 = vadd.f32 0.0, %v708
        %710 = vmatmul.bf16.gmra.mxu0 %v640
        %v711 = vpop.f32.mrf.mxu0
        %v712 = vadd.f32 0.0, %v711
        %v713 = vpop.f32.mrf.mxu0
        %v714 = vadd.f32 0.0, %v713
        %715 = vmatmul.bf16.gmra.mxu0 %v643
        %v716 = vpop.f32.mrf.mxu0
        %v717 = vadd.f32 0.0, %v716
        %v718 = vpop.f32.mrf.mxu0
        %v719 = vadd.f32 0.0, %v718
        %720 = vmatmul.bf16.gmra.mxu0 %v646
        %v721 = vpop.f32.mrf.mxu0
        %v722 = vadd.f32 0.0, %v721
        %v723 = vpop.f32.mrf.mxu0
        %v724 = vadd.f32 0.0, %v723
        %725 = vmatmul.bf16.gmra.mxu0 %v649
        %v726 = vpop.f32.mrf.mxu0
        %v727 = vadd.f32 0.0, %v726
        %v728 = vpop.f32.mrf.mxu0
        %v729 = vadd.f32 0.0, %v728
        %730 = vmatmul.bf16.gmra.mxu0 %v652
        %v731 = vpop.f32.mrf.mxu0
        %v732 = vadd.f32 0.0, %v731
        %v733 = vpop.f32.mrf.mxu0
        %v734 = vadd.f32 0.0, %v733
        %735 = vmatmul.bf16.gmra.mxu0 %v655
        %v736 = vpop.f32.mrf.mxu0
        %v737 = vadd.f32 0.0, %v736
        %v738 = vpop.f32.mrf.mxu0
        %v739 = vadd.f32 0.0, %v738
        %740 = vmatmul.bf16.gmra.mxu0 %v658
        %v741 = vpop.f32.mrf.mxu0
        %v742 = vadd.f32 0.0, %v741
        %v743 = vpop.f32.mrf.mxu0
        %v744 = vadd.f32 0.0, %v743
        %745 = vmatmul.bf16.gmra.mxu0 %v661
        %v746 = vpop.f32.mrf.mxu0
        %v747 = vadd.f32 0.0, %v746
        %v748 = vpop.f32.mrf.mxu0
        %v749 = vadd.f32 0.0, %v748
        %750 = vmatmul.bf16.gmra.mxu0 %v664
        %v751 = vpop.f32.mrf.mxu0
        %v752 = vadd.f32 0.0, %v751
        %v753 = vpop.f32.mrf.mxu0
        %v754 = vadd.f32 0.0, %v753
        %755 = vmatmul.bf16.gmra.mxu0 %v667
        %v756 = vpop.f32.mrf.mxu0
        %v757 = vadd.f32 0.0, %v756
        %v758 = vpop.f32.mrf.mxu0
        %v759 = vadd.f32 0.0, %v758
        %760 = vdwg.mxu0
        %v761 = vadd.f32 %v485, %v682
        %v762 = vadd.f32 %v487, %v684
        %v763 = vadd.f32 %v490, %v687
        %v764 = vadd.f32 %v492, %v689
        %v765 = vadd.f32 %v495, %v692
        %v766 = vadd.f32 %v497, %v694
        %v767 = vadd.f32 %v500, %v697
        %v768 = vadd.f32 %v502, %v699
        %v769 = vadd.f32 %v505, %v702
        %v770 = vadd.f32 %v507, %v704
        %v771 = vadd.f32 %v510, %v707
        %v772 = vadd.f32 %v512, %v709
        %v773 = vadd.f32 %v515, %v712
        %v774 = vadd.f32 %v517, %v714
        %v775 = vadd.f32 %v520, %v717
        %v776 = vadd.f32 %v522, %v719
        %v777 = vadd.f32 %v525, %v722
        %v778 = vadd.f32 %v527, %v724
        %v779 = vadd.f32 %v530, %v727
        %v780 = vadd.f32 %v532, %v729
        %v781 = vadd.f32 %v535, %v732
        %v782 = vadd.f32 %v537, %v734
        %v783 = vadd.f32 %v540, %v737
        %v784 = vadd.f32 %v542, %v739
        %v785 = vadd.f32 %v545, %v742
        %v786 = vadd.f32 %v547, %v744
        %v787 = vadd.f32 %v550, %v747
        %v788 = vadd.f32 %v552, %v749
        %v789 = vadd.f32 %v555, %v752
        %v790 = vadd.f32 %v557, %v754
        %v791 = vadd.f32 %v560, %v757
        %v792 = vadd.f32 %v562, %v759
        %v793 = vld [vmem:[%s2] sm:$0x1]
        %v795 = vperm.slane %v793, 0
        %v797 = vadd.f32 %v761, %v795
        %v798 = vadd.f32 %v762, %v795
        %v799 = vadd.f32 %v763, %v795
        %v800 = vadd.f32 %v764, %v795
        %v801 = vadd.f32 %v765, %v795
        %v802 = vadd.f32 %v766, %v795
        %v803 = vadd.f32 %v767, %v795
        %v804 = vadd.f32 %v768, %v795
        %v805 = vadd.f32 %v769, %v795
        %v806 = vadd.f32 %v770, %v795
        %v807 = vadd.f32 %v771, %v795
        %v808 = vadd.f32 %v772, %v795
        %v809 = vadd.f32 %v773, %v795
        %v810 = vadd.f32 %v774, %v795
        %v811 = vadd.f32 %v775, %v795
        %v812 = vadd.f32 %v776, %v795
        %v813 = vadd.f32 %v777, %v795
        %v814 = vadd.f32 %v778, %v795
        %v815 = vadd.f32 %v779, %v795
        %v816 = vadd.f32 %v780, %v795
        %v817 = vadd.f32 %v781, %v795
        %v818 = vadd.f32 %v782, %v795
        %v819 = vadd.f32 %v783, %v795
        %v820 = vadd.f32 %v784, %v795
        %v821 = vadd.f32 %v785, %v795
        %v822 = vadd.f32 %v786, %v795
        %v823 = vadd.f32 %v787, %v795
        %v824 = vadd.f32 %v788, %v795
        %v825 = vadd.f32 %v789, %v795
        %v826 = vadd.f32 %v790, %v795
        %v827 = vadd.f32 %v791, %v795
        %v828 = vadd.f32 %v792, %v795
        %v829 = vmax.f32 %v797, 0.0
        %v830 = vmax.f32 %v798, 0.0
        %v831 = vmax.f32 %v799, 0.0
        %v832 = vmax.f32 %v800, 0.0
        %v833 = vmax.f32 %v801, 0.0
        %v834 = vmax.f32 %v802, 0.0
        %v835 = vmax.f32 %v803, 0.0
        %v836 = vmax.f32 %v804, 0.0
        %v837 = vmax.f32 %v805, 0.0
        %v838 = vmax.f32 %v806, 0.0
        %v839 = vmax.f32 %v807, 0.0
        %v840 = vmax.f32 %v808, 0.0
        %v841 = vmax.f32 %v809, 0.0
        %v842 = vmax.f32 %v810, 0.0
        %v843 = vmax.f32 %v811, 0.0
        %v844 = vmax.f32 %v812, 0.0
        %v845 = vmax.f32 %v813, 0.0
        %v846 = vmax.f32 %v814, 0.0
        %v847 = vmax.f32 %v815, 0.0
        %v848 = vmax.f32 %v816, 0.0
        %v849 = vmax.f32 %v817, 0.0
        %v850 = vmax.f32 %v818, 0.0
        %v851 = vmax.f32 %v819, 0.0
        %v852 = vmax.f32 %v820, 0.0
        %v853 = vmax.f32 %v821, 0.0
        %v854 = vmax.f32 %v822, 0.0
        %v855 = vmax.f32 %v823, 0.0
        %v856 = vmax.f32 %v824, 0.0
        %v857 = vmax.f32 %v825, 0.0
        %v858 = vmax.f32 %v826, 0.0
        %v859 = vmax.f32 %v827, 0.0
        %v860 = vmax.f32 %v828, 0.0
        %861 = vst [vmem:[%s163] sm:$0xff] %v829
        %862 = vst [vmem:[%s163 + $0x8] sm:$0xff] %v830
        %863 = vst [vmem:[%s163 + $0x10] sm:$0xff] %v831
        %864 = vst [vmem:[%s163 + $0x18] sm:$0xff] %v832
        %865 = vst [vmem:[%s163 + $0x20] sm:$0xff] %v833
        %866 = vst [vmem:[%s163 + $0x28] sm:$0xff] %v834
        %867 = vst [vmem:[%s163 + $0x30] sm:$0xff] %v835
        %868 = vst [vmem:[%s163 + $0x38] sm:$0xff] %v836
        %869 = vst [vmem:[%s163 + $0x40] sm:$0xff] %v837
        %870 = vst [vmem:[%s163 + $0x48] sm:$0xff] %v838
        %871 = vst [vmem:[%s163 + $0x50] sm:$0xff] %v839
        %872 = vst [vmem:[%s163 + $0x58] sm:$0xff] %v840
        %873 = vst [vmem:[%s163 + $0x60] sm:$0xff] %v841
        %874 = vst [vmem:[%s163 + $0x68] sm:$0xff] %v842
        %875 = vst [vmem:[%s163 + $0x70] sm:$0xff] %v843
        %876 = vst [vmem:[%s163 + $0x78] sm:$0xff] %v844
        %877 = vst [vmem:[%s163 + $0x80] sm:$0xff] %v845
        %878 = vst [vmem:[%s163 + $0x88] sm:$0xff] %v846
        %879 = vst [vmem:[%s163 + $0x90] sm:$0xff] %v847
        %880 = vst [vmem:[%s163 + $0x98] sm:$0xff] %v848
        %881 = vst [vmem:[%s163 + $0xa0] sm:$0xff] %v849
        %882 = vst [vmem:[%s163 + $0xa8] sm:$0xff] %v850
        %883 = vst [vmem:[%s163 + $0xb0] sm:$0xff] %v851
        %884 = vst [vmem:[%s163 + $0xb8] sm:$0xff] %v852
        %885 = vst [vmem:[%s163 + $0xc0] sm:$0xff] %v853
        %886 = vst [vmem:[%s163 + $0xc8] sm:$0xff] %v854
        %887 = vst [vmem:[%s163 + $0xd0] sm:$0xff] %v855
        %888 = vst [vmem:[%s163 + $0xd8] sm:$0xff] %v856
        %889 = vst [vmem:[%s163 + $0xe0] sm:$0xff] %v857
        %890 = vst [vmem:[%s163 + $0xe8] sm:$0xff] %v858
        %891 = vst [vmem:[%s163 + $0xf0] sm:$0xff] %v859
        %892 = vst [vmem:[%s163 + $0xf8] sm:$0xff] %v860
        %s893 = sand.u32 %s93, 1
        %s894 = scalar_lea.sflag [#allocation3], %s893
        %s895 = sand.u32 %s93, 1
        %s896 = smul.addr %s895, 256
        %s897 = scalar_lea.vmem [#allocation2], %s896
        // Predicated region
        $region33: #{tpu_custom_call.1} parent=31 // pred_check
          %p898 = pneg %p103
        $region34: #{tpu_custom_call.1} parent=31 // pred_check_branch
          %900 = sbr.rel (%p898) target = $region36
        $region35: #{tpu_custom_call.1} parent=31 // pred_region
          %902 = vsyncadd %s894, 0
          %s903 = smul.addr %s17, 32
          %s904 = smul.addr %s903, 8
          %s905 = scalar_lea.hbm %s3, %s904
          %s906 = sshll.u32 %s897, 4
          %s907 = int_to_ptr.vmem [resolvable:$true] %s906
          %s908 = sshll.u32 %s905, 4
          %s909 = int_to_ptr.hbm [resolvable:$true] %s908
          %914 = dma.vmem_to_hbm [thread:$0]  %s907, 4096, %s909, %s894, 128, 128, 8
        $region36: #{tpu_custom_call.1} parent=31 // pred_fallthru
          _
      $region32: #{tpu_custom_call.1} parent=5 // pred_fallthru
        _
      %p915 = scmp.le.s32.totalorder 2, %s12
      // Predicated region
      $region37: #{tpu_custom_call.1} parent=5 // pred_check
        %p916 = pneg %p915
      $region38: #{tpu_custom_call.1} parent=5 // pred_check_branch
        %918 = sbr.rel (%p916) target = $region40
      $region39: #{tpu_custom_call.1} parent=5 // pred_region
        %s919 = ssub.s32 %s12, 2
        // Predicated region
        $region41: #{tpu_custom_call.1} parent=39 // pred_check
          %p920 = pneg %p109
        $region42: #{tpu_custom_call.1} parent=39 // pred_check_branch
          %922 = sbr.rel (%p920) target = $region44
        $region43: #{tpu_custom_call.1} parent=39 // pred_region
          %s923 = sand.u32 %s94, 1
          %s924 = scalar_lea.sflag [#allocation3], %s923
          %s925 = sand.u32 %s94, 1
          %s926 = smul.addr %s925, 256
          %s927 = scalar_lea.vmem [#allocation2], %s926
          %929 = dma.done %s924, 4096
        $region44: #{tpu_custom_call.1} parent=39 // pred_fallthru
          _
      $region40: #{tpu_custom_call.1} parent=5 // pred_fallthru
        _
    $region6: #{tpu_custom_call.1} parent=1 // loop_footer
      %s16 = sadd.s32 1, %s12
    $region7: #{tpu_custom_call.1} parent=1 // loop_footer_branch
      %11 = sbr.rel target = $region3
    $region8: #{tpu_custom_call.1} parent=1 // loop_exit
      _
    %930 = vsyncpa [#allocation3], 1
    %s931 = scalar_lea.sflag [#allocation3], 1
    %932 = vsyncpa %s931, 1

</llo_original>
